<compile_context>
chip_gen: v5e
topology: v5e:2x2
jax: 0.10.0
libtpu: 0.0.40
codegen_flags: <defaults>
</compile_context>

<pallas_src>
import functools

import jax
import jax.numpy as jnp
from jax.experimental import pallas as pl
from jax.experimental.pallas import tpu as pltpu

# ---- problem sizes ----------------------------------------------------------
D_COMM = 16       # config.d_comm_state
D_REL = 16        # config.d_relation
D_IN = D_COMM + D_REL
D_HID = 32        # make_net hidden widths
D_HET = 8         # config.d_het_weights
D_MSG = 16        # message dimension carried by f_weights
N_EDGES = 256     # batched edge count (lane-aligned)
STREAM_DTYPE = jnp.bfloat16   # storage dtype of the streamed operands


def filter_kernel(mij_t_ref, fw_t_ref,
                  w1r_t_ref, b1_ref, w2_t_ref, b2_ref, w3_t_ref, b3_ref,
                  out_ref):
    """Transposed-layout MLP + heterogeneous-weights contraction.

    Shapes (edge tile on the lane axis):
      mij_t : (D_REL, T)  bf16        fw_t : (D_HET, D_MSG, T)  bf16
      w1r_t : (D_HID, D_REL)          b1   : (D_HID, 1)   (zei folded in)
      w2_t  : (D_HID, D_HID)          b2   : (D_HID, 1)
      w3_t  : (D_HET, D_HID)          b3   : (D_HET, 1)
      out   : (D_MSG, T)  f32
    """
    # Streamed operands are stored bf16 (half the HBM traffic); math stays f32.
    # TODO(synk): on v6e/v7x the first matmul could consume bf16 on the MXU
    # directly (skip this upcast); kept f32 so the same kernel runs on v5e.
    x_t = mij_t_ref[...].astype(jnp.float32)                  # (D_REL, T)

    # Layer 1: zei @ W1[:D_COMM] already folded into b1 (effective bias).
    h1 = jnp.dot(w1r_t_ref[...], x_t,
                 preferred_element_type=jnp.float32) + b1_ref[...]
    h1 = jnp.maximum(h1, 0.0)                                 # (D_HID, T)

    # Layer 2
    h2 = jnp.dot(w2_t_ref[...], h1,
                 preferred_element_type=jnp.float32) + b2_ref[...]
    h2 = jnp.maximum(h2, 0.0)                                 # (D_HID, T)

    # Output head (no activation)
    y = jnp.dot(w3_t_ref[...], h2,
                preferred_element_type=jnp.float32) + b3_ref[...]
    # y: (D_HET, T)

    # apply_heterogeneous_weights: out[m, n] = sum_k y[k, n] * fw[k, m, n]
    # Unrolled as D_HET lane-dense VPU FMAs; per-k ref reads keep the live
    # vreg count bounded even for large lane tiles.
    acc = y[0:1, :] * fw_t_ref[0].astype(jnp.float32)         # (D_MSG, T)
    for k in range(1, D_HET):
        acc = acc + y[k:k + 1, :] * fw_t_ref[k].astype(jnp.float32)
    out_ref[...] = acc                                        # lane-dense store


def prepare_params(params):
    """One-time layout plumbing (call once, outside the per-step hot path)."""
    w1, b1, w2, b2, w3, b3 = params
    return {
        "w1c_t": w1[:D_COMM].T,          # (D_HID, D_COMM) - used for zei fold
        "w1r_t": w1[D_COMM:].T,          # (D_HID, D_REL)
        "b1": b1.reshape(D_HID, 1),
        "w2_t": w2.T,                    # (D_HID, D_HID)
        "b2": b2.reshape(D_HID, 1),
        "w3_t": w3.T,                    # (D_HET, D_HID)
        "b3": b3.reshape(D_HET, 1),
    }


def pick_tile_n(n):
    """One grid step per TensorCore (v7x has 2 TCs), capped at 1024 lanes."""
    try:
        kind = jax.devices()[0].device_kind.lower()
    except Exception:  # pragma: no cover - conservative fallback
        kind = ""
    two_tc = ("v7" in kind) or ("7x" in kind)
    tile = n
    if two_tc and n % 256 == 0:
        tile = n // 2                     # keep both TCs busy
    while tile > 1024 and tile % 256 == 0 and n % (tile // 2) == 0:
        tile //= 2                        # bound VMEM / vreg pressure
    if tile != n and tile % 128 != 0:     # lane-alignment guard
        tile = n
    return tile


@functools.partial(jax.jit, static_argnames=("tile_n",))
def filter_forward(zei, mij_t, fw_t, prep, tile_n):
    """Hot path.  mij_t: (D_REL, N), fw_t: (D_HET, D_MSG, N) -> (D_MSG, N).

    Streamed operands arrive in the kernel's lane-major layout (produced
    upstream), so there are no per-call transposes of the dominant stream and
    the output is returned lane-major as well.
    """
    n = mij_t.shape[1]
    assert n % tile_n == 0, "edge count must be a multiple of the lane tile"

    # Fold the (shared) zei term into an effective first-layer bias -- exact.
    b1_eff = prep["b1"] + prep["w1c_t"] @ zei.reshape(D_COMM, 1)   # (D_HID, 1)

    resident = lambda shape: pl.BlockSpec(shape, lambda i: (0,) * len(shape))

    out_t = pl.pallas_call(
        filter_kernel,
        out_shape=jax.ShapeDtypeStruct((D_MSG, n), jnp.float32),
        grid_spec=pltpu.PrefetchScalarGridSpec(
            num_scalar_prefetch=0,
            grid=(n // tile_n,),
            in_specs=[
                pl.BlockSpec((D_REL, tile_n), lambda i: (0, i)),           # Mij^T (streamed)
                pl.BlockSpec((D_HET, D_MSG, tile_n), lambda i: (0, 0, i)), # fw^T  (streamed)
                resident((D_HID, D_REL)),                                  # w1 (rel part)
                resident((D_HID, 1)),                                      # b1_eff
                resident((D_HID, D_HID)),                                  # w2
                resident((D_HID, 1)),                                      # b2
                resident((D_HET, D_HID)),                                  # w3
                resident((D_HET, 1)),                                      # b3
            ],
            out_specs=pl.BlockSpec((D_MSG, tile_n), lambda i: (0, i)),
        ),
        compiler_params=pltpu.CompilerParams(
            dimension_semantics=("parallel",)),
    )(mij_t, fw_t, prep["w1r_t"], b1_eff, prep["w2_t"], prep["b2"],
      prep["w3_t"], prep["b3"])

    return out_t                                              # (D_MSG, N)


def filter_reference(zei, Mij, f_weights, params):
    """Pure-JAX reference of the PyTorch forward (original layouts)."""
    w1, b1, w2, b2, w3, b3 = params
    n = Mij.shape[0]
    zei_exp = jnp.broadcast_to(zei.reshape(1, -1), (n, D_COMM))
    x = jnp.concatenate([zei_exp, Mij], axis=1)
    h1 = jax.nn.relu(x @ w1 + b1)
    h2 = jax.nn.relu(h1 @ w2 + b2)
    y = h2 @ w3 + b3
    return jnp.einsum("nk,nkm->nm", y, f_weights)


def init_params(key):
    """Deterministic synthetic init (shapes from make_net([D_IN, 32, 32, D_HET]))."""
    ks = jax.random.split(key, 6)

    def lin(kw, kb, fan_in, fan_out):
        bound = 1.0 / jnp.sqrt(fan_in)
        w = jax.random.uniform(kw, (fan_in, fan_out), jnp.float32, -bound, bound)
        b = jax.random.uniform(kb, (1, fan_out), jnp.float32, -bound, bound)
        return w, b

    w1, b1 = lin(ks[0], ks[1], D_IN, D_HID)
    w2, b2 = lin(ks[2], ks[3], D_HID, D_HID)
    w3, b3 = lin(ks[4], ks[5], D_HID, D_HET)
    return (w1, b1, w2, b2, w3, b3)


if __name__ == "__main__":
    key = jax.random.PRNGKey(0)
    k_zei, k_mij, k_fw, k_params = jax.random.split(key, 4)

    zei = jax.random.normal(k_zei, (D_COMM,), jnp.float32)
    # Streamed operands are produced directly in the kernel's lane-major layout
    # and bf16 storage dtype (no per-call transpose / cast on the hot path).
    mij_t = jax.random.normal(k_mij, (D_REL, N_EDGES), jnp.float32).astype(STREAM_DTYPE)
    fw_t = jax.random.normal(k_fw, (D_HET, D_MSG, N_EDGES), jnp.float32).astype(STREAM_DTYPE)
    params = init_params(k_params)
    prep = prepare_params(params)

    tile_n = pick_tile_n(N_EDGES)
    out_t = filter_forward(zei, mij_t, fw_t, prep, tile_n=tile_n)
    out_t = jax.block_until_ready(out_t)

    # Verification only: test-side transposes back to the original PyTorch
    # layouts (the hot path itself never transposes the streamed operands).
    Mij = mij_t.astype(jnp.float32).T                                # (N, D_REL)
    f_weights = jnp.transpose(fw_t.astype(jnp.float32), (2, 0, 1))   # (N, D_HET, D_MSG)
    ref = filter_reference(zei, Mij, f_weights, params)

    assert out_t.shape == (D_MSG, N_EDGES)
    assert jnp.allclose(out_t.T, ref, atol=1e-3, rtol=1e-3), "mismatch vs reference"

    print("KERNEL_OK")
</pallas_src>

<mosaic_0001>
module attributes {stable_mosaic.version = 11 : i64} {
  func.func @filter_kernel(%arg0: i32, %arg1: memref<16x256xbf16, #tpu.memory_space<vmem>>, %arg2: memref<8x16x256xbf16, #tpu.memory_space<vmem>>, %arg3: memref<32x16xf32, #tpu.memory_space<vmem>>, %arg4: memref<32x1xf32, #tpu.memory_space<vmem>>, %arg5: memref<32x32xf32, #tpu.memory_space<vmem>>, %arg6: memref<32x1xf32, #tpu.memory_space<vmem>>, %arg7: memref<8x32xf32, #tpu.memory_space<vmem>>, %arg8: memref<8x1xf32, #tpu.memory_space<vmem>>, %arg9: memref<16x256xf32, #tpu.memory_space<vmem>>) attributes {dimension_semantics = [#tpu.dimension_semantics<parallel>], iteration_bounds = array<i64: 1>, scalar_prefetch = 0 : i64, scratch_operands = 0 : i64, tpu.core_type = #tpu.core_type<tc>, window_params = [{transform_indices = @transform_0, window_bounds = array<i64: 16, 256>}, {transform_indices = @transform_1, window_bounds = array<i64: 8, 16, 256>}, {pipeline_mode = #tpu.pipeline_mode<synchronous>, transform_indices = @transform_2, window_bounds = array<i64: 32, 16>}, {pipeline_mode = #tpu.pipeline_mode<synchronous>, transform_indices = @transform_3, window_bounds = array<i64: 32, 1>}, {pipeline_mode = #tpu.pipeline_mode<synchronous>, transform_indices = @transform_4, window_bounds = array<i64: 32, 32>}, {pipeline_mode = #tpu.pipeline_mode<synchronous>, transform_indices = @transform_5, window_bounds = array<i64: 32, 1>}, {pipeline_mode = #tpu.pipeline_mode<synchronous>, transform_indices = @transform_6, window_bounds = array<i64: 8, 32>}, {pipeline_mode = #tpu.pipeline_mode<synchronous>, transform_indices = @transform_7, window_bounds = array<i64: 8, 1>}, {transform_indices = @transform_8, window_bounds = array<i64: 16, 256>}]} {
    %c0 = arith.constant 0 : index
    %c0_0 = arith.constant 0 : index
    %0 = vector.load %arg1[%c0, %c0_0] : memref<16x256xbf16, #tpu.memory_space<vmem>>, vector<16x256xbf16>
    %1 = arith.extf %0 : vector<16x256xbf16> to vector<16x256xf32>
    %c0_1 = arith.constant 0 : index
    %c0_2 = arith.constant 0 : index
    %2 = vector.load %arg3[%c0_1, %c0_2] : memref<32x16xf32, #tpu.memory_space<vmem>>, vector<32x16xf32>
    %cst = arith.constant dense<0.000000e+00> : vector<32x256xf32>
    %3 = tpu.matmul %2, %1, %cst {dimension_numbers = #tpu.dot_dimension_numbers<[1], [0], [0], [1], [0, 0, 1, 1], [], []>} : vector<32x16xf32>, vector<16x256xf32>, vector<32x256xf32> -> vector<32x256xf32>
    %c0_3 = arith.constant 0 : index
    %c0_4 = arith.constant 0 : index
    %4 = vector.load %arg4[%c0_3, %c0_4] : memref<32x1xf32, #tpu.memory_space<vmem>>, vector<32x1xf32>
    %5 = vector.broadcast %4 : vector<32x1xf32> to vector<32x256xf32>
    %6 = arith.addf %3, %5 : vector<32x256xf32>
    %cst_5 = arith.constant 0.000000e+00 : f32
    %7 = vector.broadcast %cst_5 : f32 to vector<32x256xf32>
    %8 = arith.maximumf %6, %7 : vector<32x256xf32>
    %c0_6 = arith.constant 0 : index
    %c0_7 = arith.constant 0 : index
    %9 = vector.load %arg5[%c0_6, %c0_7] : memref<32x32xf32, #tpu.memory_space<vmem>>, vector<32x32xf32>
    %cst_8 = arith.constant dense<0.000000e+00> : vector<32x256xf32>
    %10 = tpu.matmul %9, %8, %cst_8 {dimension_numbers = #tpu.dot_dimension_numbers<[1], [0], [0], [1], [0, 0, 1, 1], [], []>} : vector<32x32xf32>, vector<32x256xf32>, vector<32x256xf32> -> vector<32x256xf32>
    %c0_9 = arith.constant 0 : index
    %c0_10 = arith.constant 0 : index
    %11 = vector.load %arg6[%c0_9, %c0_10] : memref<32x1xf32, #tpu.memory_space<vmem>>, vector<32x1xf32>
    %12 = vector.broadcast %11 : vector<32x1xf32> to vector<32x256xf32>
    %13 = arith.addf %10, %12 : vector<32x256xf32>
    %cst_11 = arith.constant 0.000000e+00 : f32
    %14 = vector.broadcast %cst_11 : f32 to vector<32x256xf32>
    %15 = arith.maximumf %13, %14 : vector<32x256xf32>
    %c0_12 = arith.constant 0 : index
    %c0_13 = arith.constant 0 : index
    %16 = vector.load %arg7[%c0_12, %c0_13] : memref<8x32xf32, #tpu.memory_space<vmem>>, vector<8x32xf32>
    %cst_14 = arith.constant dense<0.000000e+00> : vector<8x256xf32>
    %17 = tpu.matmul %16, %15, %cst_14 {dimension_numbers = #tpu.dot_dimension_numbers<[1], [0], [0], [1], [0, 0, 1, 1], [], []>} : vector<8x32xf32>, vector<32x256xf32>, vector<8x256xf32> -> vector<8x256xf32>
    %c0_15 = arith.constant 0 : index
    %c0_16 = arith.constant 0 : index
    %18 = vector.load %arg8[%c0_15, %c0_16] : memref<8x1xf32, #tpu.memory_space<vmem>>, vector<8x1xf32>
    %19 = vector.broadcast %18 : vector<8x1xf32> to vector<8x256xf32>
    %20 = arith.addf %17, %19 : vector<8x256xf32>
    %21 = vector.extract_strided_slice %20 {offsets = [0, 0], sizes = [1, 256], strides = [1, 1]} : vector<8x256xf32> to vector<1x256xf32>
    %c0_17 = arith.constant 0 : index
    %c0_18 = arith.constant 0 : index
    %c0_19 = arith.constant 0 : index
    %22 = vector.load %arg2[%c0_17, %c0_18, %c0_19] : memref<8x16x256xbf16, #tpu.memory_space<vmem>>, vector<1x16x256xbf16>
    %23 = vector.shape_cast %22 : vector<1x16x256xbf16> to vector<16x256xbf16>
    %24 = arith.extf %23 : vector<16x256xbf16> to vector<16x256xf32>
    %25 = vector.broadcast %21 : vector<1x256xf32> to vector<16x256xf32>
    %26 = arith.mulf %25, %24 : vector<16x256xf32>
    %27 = vector.extract_strided_slice %20 {offsets = [1, 0], sizes = [1, 256], strides = [1, 1]} : vector<8x256xf32> to vector<1x256xf32>
    %c1 = arith.constant 1 : index
    %c0_20 = arith.constant 0 : index
    %c0_21 = arith.constant 0 : index
    %28 = vector.load %arg2[%c1, %c0_20, %c0_21] : memref<8x16x256xbf16, #tpu.memory_space<vmem>>, vector<1x16x256xbf16>
    %29 = vector.shape_cast %28 : vector<1x16x256xbf16> to vector<16x256xbf16>
    %30 = arith.extf %29 : vector<16x256xbf16> to vector<16x256xf32>
    %31 = vector.broadcast %27 : vector<1x256xf32> to vector<16x256xf32>
    %32 = arith.mulf %31, %30 : vector<16x256xf32>
    %33 = arith.addf %26, %32 : vector<16x256xf32>
    %34 = vector.extract_strided_slice %20 {offsets = [2, 0], sizes = [1, 256], strides = [1, 1]} : vector<8x256xf32> to vector<1x256xf32>
    %c2 = arith.constant 2 : index
    %c0_22 = arith.constant 0 : index
    %c0_23 = arith.constant 0 : index
    %35 = vector.load %arg2[%c2, %c0_22, %c0_23] : memref<8x16x256xbf16, #tpu.memory_space<vmem>>, vector<1x16x256xbf16>
    %36 = vector.shape_cast %35 : vector<1x16x256xbf16> to vector<16x256xbf16>
    %37 = arith.extf %36 : vector<16x256xbf16> to vector<16x256xf32>
    %38 = vector.broadcast %34 : vector<1x256xf32> to vector<16x256xf32>
    %39 = arith.mulf %38, %37 : vector<16x256xf32>
    %40 = arith.addf %33, %39 : vector<16x256xf32>
    %41 = vector.extract_strided_slice %20 {offsets = [3, 0], sizes = [1, 256], strides = [1, 1]} : vector<8x256xf32> to vector<1x256xf32>
    %c3 = arith.constant 3 : index
    %c0_24 = arith.constant 0 : index
    %c0_25 = arith.constant 0 : index
    %42 = vector.load %arg2[%c3, %c0_24, %c0_25] : memref<8x16x256xbf16, #tpu.memory_space<vmem>>, vector<1x16x256xbf16>
    %43 = vector.shape_cast %42 : vector<1x16x256xbf16> to vector<16x256xbf16>
    %44 = arith.extf %43 : vector<16x256xbf16> to vector<16x256xf32>
    %45 = vector.broadcast %41 : vector<1x256xf32> to vector<16x256xf32>
    %46 = arith.mulf %45, %44 : vector<16x256xf32>
    %47 = arith.addf %40, %46 : vector<16x256xf32>
    %48 = vector.extract_strided_slice %20 {offsets = [4, 0], sizes = [1, 256], strides = [1, 1]} : vector<8x256xf32> to vector<1x256xf32>
    %c4 = arith.constant 4 : index
    %c0_26 = arith.constant 0 : index
    %c0_27 = arith.constant 0 : index
    %49 = vector.load %arg2[%c4, %c0_26, %c0_27] : memref<8x16x256xbf16, #tpu.memory_space<vmem>>, vector<1x16x256xbf16>
    %50 = vector.shape_cast %49 : vector<1x16x256xbf16> to vector<16x256xbf16>
    %51 = arith.extf %50 : vector<16x256xbf16> to vector<16x256xf32>
    %52 = vector.broadcast %48 : vector<1x256xf32> to vector<16x256xf32>
    %53 = arith.mulf %52, %51 : vector<16x256xf32>
    %54 = arith.addf %47, %53 : vector<16x256xf32>
    %55 = vector.extract_strided_slice %20 {offsets = [5, 0], sizes = [1, 256], strides = [1, 1]} : vector<8x256xf32> to vector<1x256xf32>
    %c5 = arith.constant 5 : index
    %c0_28 = arith.constant 0 : index
    %c0_29 = arith.constant 0 : index
    %56 = vector.load %arg2[%c5, %c0_28, %c0_29] : memref<8x16x256xbf16, #tpu.memory_space<vmem>>, vector<1x16x256xbf16>
    %57 = vector.shape_cast %56 : vector<1x16x256xbf16> to vector<16x256xbf16>
    %58 = arith.extf %57 : vector<16x256xbf16> to vector<16x256xf32>
    %59 = vector.broadcast %55 : vector<1x256xf32> to vector<16x256xf32>
    %60 = arith.mulf %59, %58 : vector<16x256xf32>
    %61 = arith.addf %54, %60 : vector<16x256xf32>
    %62 = vector.extract_strided_slice %20 {offsets = [6, 0], sizes = [1, 256], strides = [1, 1]} : vector<8x256xf32> to vector<1x256xf32>
    %c6 = arith.constant 6 : index
    %c0_30 = arith.constant 0 : index
    %c0_31 = arith.constant 0 : index
    %63 = vector.load %arg2[%c6, %c0_30, %c0_31] : memref<8x16x256xbf16, #tpu.memory_space<vmem>>, vector<1x16x256xbf16>
    %64 = vector.shape_cast %63 : vector<1x16x256xbf16> to vector<16x256xbf16>
    %65 = arith.extf %64 : vector<16x256xbf16> to vector<16x256xf32>
    %66 = vector.broadcast %62 : vector<1x256xf32> to vector<16x256xf32>
    %67 = arith.mulf %66, %65 : vector<16x256xf32>
    %68 = arith.addf %61, %67 : vector<16x256xf32>
    %69 = vector.extract_strided_slice %20 {offsets = [7, 0], sizes = [1, 256], strides = [1, 1]} : vector<8x256xf32> to vector<1x256xf32>
    %c7 = arith.constant 7 : index
    %c0_32 = arith.constant 0 : index
    %c0_33 = arith.constant 0 : index
    %70 = vector.load %arg2[%c7, %c0_32, %c0_33] : memref<8x16x256xbf16, #tpu.memory_space<vmem>>, vector<1x16x256xbf16>
    %71 = vector.shape_cast %70 : vector<1x16x256xbf16> to vector<16x256xbf16>
    %72 = arith.extf %71 : vector<16x256xbf16> to vector<16x256xf32>
    %73 = vector.broadcast %69 : vector<1x256xf32> to vector<16x256xf32>
    %74 = arith.mulf %73, %72 : vector<16x256xf32>
    %75 = arith.addf %68, %74 : vector<16x256xf32>
    %c0_34 = arith.constant 0 : index
    %c0_35 = arith.constant 0 : index
    %76 = vector.load %arg9[%c0_34, %c0_35] : memref<16x256xf32, #tpu.memory_space<vmem>>, vector<16x256xf32>
    tpu.vector_store %arg9[%c0_34, %c0_35], %75 {strides = array<i32>} : memref<16x256xf32, #tpu.memory_space<vmem>>, vector<16x256xf32>,
    return
  }
  func.func @transform_0(%arg0: i32) -> (i32, i32) {
    %c0_i32 = arith.constant 0 : i32
    %c0_i32_0 = arith.constant 0 : i32
    return %c0_i32, %arg0 : i32, i32
  }
  func.func @transform_1(%arg0: i32) -> (i32, i32, i32) {
    %c0_i32 = arith.constant 0 : i32
    %c0_i32_0 = arith.constant 0 : i32
    %c0_i32_1 = arith.constant 0 : i32
    return %c0_i32, %c0_i32_0, %arg0 : i32, i32, i32
  }
  func.func @transform_2(%arg0: i32) -> (i32, i32) {
    %c0_i32 = arith.constant 0 : i32
    %c0_i32_0 = arith.constant 0 : i32
    %c0_i32_1 = arith.constant 0 : i32
    return %c0_i32, %c0_i32_0 : i32, i32
  }
  func.func @transform_3(%arg0: i32) -> (i32, i32) {
    %c0_i32 = arith.constant 0 : i32
    %c0_i32_0 = arith.constant 0 : i32
    %c0_i32_1 = arith.constant 0 : i32
    return %c0_i32, %c0_i32_0 : i32, i32
  }
  func.func @transform_4(%arg0: i32) -> (i32, i32) {
    %c0_i32 = arith.constant 0 : i32
    %c0_i32_0 = arith.constant 0 : i32
    %c0_i32_1 = arith.constant 0 : i32
    return %c0_i32, %c0_i32_0 : i32, i32
  }
  func.func @transform_5(%arg0: i32) -> (i32, i32) {
    %c0_i32 = arith.constant 0 : i32
    %c0_i32_0 = arith.constant 0 : i32
    %c0_i32_1 = arith.constant 0 : i32
    return %c0_i32, %c0_i32_0 : i32, i32
  }
  func.func @transform_6(%arg0: i32) -> (i32, i32) {
    %c0_i32 = arith.constant 0 : i32
    %c0_i32_0 = arith.constant 0 : i32
    %c0_i32_1 = arith.constant 0 : i32
    return %c0_i32, %c0_i32_0 : i32, i32
  }
  func.func @transform_7(%arg0: i32) -> (i32, i32) {
    %c0_i32 = arith.constant 0 : i32
    %c0_i32_0 = arith.constant 0 : i32
    %c0_i32_1 = arith.constant 0 : i32
    return %c0_i32, %c0_i32_0 : i32, i32
  }
  func.func @transform_8(%arg0: i32) -> (i32, i32) {
    %c0_i32 = arith.constant 0 : i32
    %c0_i32_0 = arith.constant 0 : i32
    return %c0_i32, %arg0 : i32, i32
  }
}

</mosaic_0001>

<llo_original>
// kernel: filter_forward.1
$region0: #{filter_forward.1}
  #allocation0 [shape = 'u32[]', space=smem, size = 0x4, offset = 0x4, fixed_abs, tag = 'smem constant byte address 0x4 - core index']
  #allocation1 [shape = 'u32[72,128]{1,0:T(1,128)}', space=vmem, size = 0x9000, scoped, tag = 'internal scratch']
  %s0 = inlined_call_operand.vmem [shape: bf16[16,256], index: 0, kind: input, shape index: {}]
  %s1 = inlined_call_operand.hbm [shape: bf16[8,16,256], index: 1, kind: input, shape index: {}]
  %s2 = inlined_call_operand.vmem [shape: f32[32,16], index: 2, kind: input, shape index: {}]
  %s3 = inlined_call_operand.vmem [shape: f32[32,1], index: 3, kind: input, shape index: {}]
  %s4 = inlined_call_operand.vmem [shape: f32[32,32], index: 4, kind: input, shape index: {}]
  %s5 = inlined_call_operand.vmem [shape: f32[32,1], index: 5, kind: input, shape index: {}]
  %s6 = inlined_call_operand.vmem [shape: f32[8,32], index: 6, kind: input, shape index: {}]
  %s7 = inlined_call_operand.vmem [shape: f32[8,1], index: 7, kind: input, shape index: {}]
  %s8 = inlined_call_operand.hbm [shape: f32[16,256], index: 8, kind: output, shape index: {}]
  %s9 = sld [smem:[#allocation0]]
  $region46: #{filter_forward.1} parent=0
    _
  %s11 = ssub.s32 1, %s9
  %s12 = scalar_select 0, %s11, %s9
  $region1: #{filter_forward.1} parent=0
    #allocation2 [shape = 'u8[65536]{0}', space=vmem, size = 0x10000, scoped, tag = 'input window, operand 1, single buffered']
    #allocation3 [shape = 's32[1]{0}', space=sflag, size = 0x4, scoped, tag = 'scoped memory for filter_forward.1']
    #allocation4 [shape = 's32[1]{0}', space=sflag, size = 0x4, scoped, tag = 'scoped memory for filter_forward.1']
    #allocation5 [shape = 'u8[16384]{0}', space=vmem, size = 0x4000, scoped, tag = 'output window, operand 0, single buffered']
    %13 = vsyncpa [#allocation3], 0
    %14 = vsyncpa [#allocation4], 0
    // Predicated region
    $region2: #{filter_forward.1} parent=1 // pred_check
      _
    $region3: #{filter_forward.1} parent=1 // pred_check_branch
      %16 = sbr.rel (0) target = $region5
    $region4: #{filter_forward.1} parent=1 // pred_region
      _
    $region5: #{filter_forward.1} parent=1 // pred_fallthru
      _
    // Predicated region
    $region6: #{filter_forward.1} parent=1 // pred_check
      _
    $region7: #{filter_forward.1} parent=1 // pred_check_branch
      %18 = sbr.rel (0) target = $region9
    $region8: #{filter_forward.1} parent=1 // pred_region
      %20 = vsyncadd [#allocation3], 0
      %s21 = sshll.u32 %s1, 4
      %s22 = int_to_ptr.hbm [resolvable:$true] %s21
      %s23 = sshll.u32 [#allocation2], 4
      %s24 = int_to_ptr.vmem [resolvable:$true] %s23
      %29 = dma.hbm_to_vmem [thread:$0]  %s22, 2048, %s24, [#allocation3], 128, 128, 8
    $region9: #{filter_forward.1} parent=1 // pred_fallthru
      _
    // Predicated region
    $region10: #{filter_forward.1} parent=1 // pred_check
      _
    $region11: #{filter_forward.1} parent=1 // pred_check_branch
      %31 = sbr.rel (0) target = $region13
    $region12: #{filter_forward.1} parent=1 // pred_region
      _
    $region13: #{filter_forward.1} parent=1 // pred_fallthru
      _
    // Predicated region
    $region14: #{filter_forward.1} parent=1 // pred_check
      _
    $region15: #{filter_forward.1} parent=1 // pred_check_branch
      %33 = sbr.rel (0) target = $region17
    $region16: #{filter_forward.1} parent=1 // pred_region
      _
    $region17: #{filter_forward.1} parent=1 // pred_fallthru
      _
    // Predicated region
    $region18: #{filter_forward.1} parent=1 // pred_check
      _
    $region19: #{filter_forward.1} parent=1 // pred_check_branch
      %35 = sbr.rel (0) target = $region21
    $region20: #{filter_forward.1} parent=1 // pred_region
      _
    $region21: #{filter_forward.1} parent=1 // pred_fallthru
      _
    // Predicated region
    $region22: #{filter_forward.1} parent=1 // pred_check
      _
    $region23: #{filter_forward.1} parent=1 // pred_check_branch
      %37 = sbr.rel (0) target = $region25
    $region24: #{filter_forward.1} parent=1 // pred_region
      _
    $region25: #{filter_forward.1} parent=1 // pred_fallthru
      _
    // Predicated region
    $region26: #{filter_forward.1} parent=1 // pred_check
      _
    $region27: #{filter_forward.1} parent=1 // pred_check_branch
      %39 = sbr.rel (0) target = $region29
    $region28: #{filter_forward.1} parent=1 // pred_region
      _
    $region29: #{filter_forward.1} parent=1 // pred_fallthru
      _
    // Predicated region
    $region30: #{filter_forward.1} parent=1 // pred_check
      _
    $region31: #{filter_forward.1} parent=1 // pred_check_branch
      %41 = sbr.rel (0) target = $region33
    $region32: #{filter_forward.1} parent=1 // pred_region
      _
    $region33: #{filter_forward.1} parent=1 // pred_fallthru
      _
    // Predicated region
    $region34: #{filter_forward.1} parent=1 // pred_check
      _
    $region35: #{filter_forward.1} parent=1 // pred_check_branch
      %43 = sbr.rel (0) target = $region37
    $region36: #{filter_forward.1} parent=1 // pred_region
      %45 = dma.done [#allocation3], 2048
    $region37: #{filter_forward.1} parent=1 // pred_fallthru
      _
    %v46 = vld [vmem:[%s0] sm:$0xff]
    %v47 = vld [vmem:[%s0 + $0x8] sm:$0xff]
    %v48 = vunpack.c.l.bf16 %v46
    %v49 = vunpack.c.h.bf16 %v46
    %v50 = vunpack.c.l.bf16 %v47
    %v51 = vunpack.c.h.bf16 %v47
    %v52 = vld [vmem:[%s2] sm:$0xff]
    %v53 = vld [vmem:[%s2 + $0x8] sm:$0xff]
    %v54 = vld [vmem:[%s2 + $0x10] sm:$0xff]
    %v55 = vld [vmem:[%s2 + $0x18] sm:$0xff]
    %v56 = vld [vmem:[%s3] sm:$0xff]
    %v57 = vld [vmem:[%s3 + $0x8] sm:$0xff]
    %v58 = vld [vmem:[%s3 + $0x10] sm:$0xff]
    %v59 = vld [vmem:[%s3 + $0x18] sm:$0xff]
    %61 = vset.pattern.permute.xlu0 0
    %62 = vperm.xlu0 %61, %v56
    %v63 = vpop.permute.xlu0 %62
    %66 = vset.pattern.permute.xlu0 0
    %67 = vperm.xlu0 %66, %v57
    %v68 = vpop.permute.xlu0 %67
    %71 = vset.pattern.permute.xlu0 0
    %72 = vperm.xlu0 %71, %v58
    %v73 = vpop.permute.xlu0 %72
    %76 = vset.pattern.permute.xlu0 0
    %77 = vperm.xlu0 %76, %v59
    %v78 = vpop.permute.xlu0 %77
    %vm80 = vcmask 130048
    %v82 = vsel %vm80, %v52, 0
    %v85 = vsel %vm80, %v53, 0
    %v88 = vsel %vm80, %v54, 0
    %v91 = vsel %vm80, %v55, 0
    %93 = vmatpush.msra.mxu0 0.0
    %94 = vmatpush.msra.mxu0 0.0
    %95 = vmatpush.msra.mxu0 0.0
    %96 = vmatpush.msra.mxu0 0.0
    %97 = vmatpush.msra.mxu0 0.0
    %98 = vmatpush.msra.mxu0 0.0
    %99 = vmatpush.msra.mxu0 0.0
    %100 = vmatpush.msra.mxu0 0.0
    %101 = vmatpush.msra.mxu0 0.0
    %102 = vmatpush.msra.mxu0 0.0
    %103 = vmatpush.msra.mxu0 0.0
    %104 = vmatpush.msra.mxu0 0.0
    %105 = vmatpush.msra.mxu0 0.0
    %106 = vmatpush.msra.mxu0 0.0
    %107 = vmatpush.msra.mxu0 %v50
    %108 = vmatpush.msra.mxu0 %v48
    %109 = vmatmul.f32.gmra.mxu0 %v82
    %v110 = vpop.f32.mrf.mxu0
    %v111 = vadd.f32 %v63, %v110
    %112 = vmatmul.f32.gmra.mxu0 %v85
    %v113 = vpop.f32.mrf.mxu0
    %v114 = vadd.f32 %v68, %v113
    %115 = vmatmul.f32.gmra.mxu0 %v88
    %v116 = vpop.f32.mrf.mxu0
    %v117 = vadd.f32 %v73, %v116
    %118 = vmatmul.f32.gmra.mxu0 %v91
    %v119 = vpop.f32.mrf.mxu0
    %v120 = vadd.f32 %v78, %v119
    %121 = vdwg.mxu0
    %122 = vmatpush.msra.mxu0 0.0
    %123 = vmatpush.msra.mxu0 0.0
    %124 = vmatpush.msra.mxu0 0.0
    %125 = vmatpush.msra.mxu0 0.0
    %126 = vmatpush.msra.mxu0 0.0
    %127 = vmatpush.msra.mxu0 0.0
    %128 = vmatpush.msra.mxu0 0.0
    %129 = vmatpush.msra.mxu0 0.0
    %130 = vmatpush.msra.mxu0 0.0
    %131 = vmatpush.msra.mxu0 0.0
    %132 = vmatpush.msra.mxu0 0.0
    %133 = vmatpush.msra.mxu0 0.0
    %134 = vmatpush.msra.mxu0 0.0
    %135 = vmatpush.msra.mxu0 0.0
    %136 = vmatpush.msra.mxu0 %v51
    %137 = vmatpush.msra.mxu0 %v49
    %138 = vmatmul.f32.gmra.mxu0 %v82
    %v139 = vpop.f32.mrf.mxu0
    %v140 = vadd.f32 %v63, %v139
    %141 = vmatmul.f32.gmra.mxu0 %v85
    %v142 = vpop.f32.mrf.mxu0
    %v143 = vadd.f32 %v68, %v142
    %144 = vmatmul.f32.gmra.mxu0 %v88
    %v145 = vpop.f32.mrf.mxu0
    %v146 = vadd.f32 %v73, %v145
    %147 = vmatmul.f32.gmra.mxu0 %v91
    %v148 = vpop.f32.mrf.mxu0
    %v149 = vadd.f32 %v78, %v148
    %150 = vdwg.mxu0
    %v151 = vmax.f32 %v111, 0.0
    %v152 = vmax.f32 %v140, 0.0
    %v153 = vmax.f32 %v114, 0.0
    %v154 = vmax.f32 %v143, 0.0
    %v155 = vmax.f32 %v117, 0.0
    %v156 = vmax.f32 %v146, 0.0
    %v157 = vmax.f32 %v120, 0.0
    %v158 = vmax.f32 %v149, 0.0
    %v159 = vld [vmem:[%s4] sm:$0xff]
    %v160 = vld [vmem:[%s4 + $0x8] sm:$0xff]
    %v161 = vld [vmem:[%s4 + $0x10] sm:$0xff]
    %v162 = vld [vmem:[%s4 + $0x18] sm:$0xff]
    %v163 = vld [vmem:[%s5] sm:$0xff]
    %v164 = vld [vmem:[%s5 + $0x8] sm:$0xff]
    %v165 = vld [vmem:[%s5 + $0x10] sm:$0xff]
    %v166 = vld [vmem:[%s5 + $0x18] sm:$0xff]
    %168 = vset.pattern.permute.xlu0 0
    %169 = vperm.xlu0 %168, %v163
    %v170 = vpop.permute.xlu0 %169
    %173 = vset.pattern.permute.xlu0 0
    %174 = vperm.xlu0 %173, %v164
    %v175 = vpop.permute.xlu0 %174
    %178 = vset.pattern.permute.xlu0 0
    %179 = vperm.xlu0 %178, %v165
    %v180 = vpop.permute.xlu0 %179
    %183 = vset.pattern.permute.xlu0 0
    %184 = vperm.xlu0 %183, %v166
    %v185 = vpop.permute.xlu0 %184
    %vm187 = vcmask 261120
    %v189 = vsel %vm187, %v159, 0
    %v192 = vsel %vm187, %v160, 0
    %v195 = vsel %vm187, %v161, 0
    %v198 = vsel %vm187, %v162, 0
    %200 = vmatpush.msra.mxu0 0.0
    %201 = vmatpush.msra.mxu0 0.0
    %202 = vmatpush.msra.mxu0 0.0
    %203 = vmatpush.msra.mxu0 0.0
    %204 = vmatpush.msra.mxu0 0.0
    %205 = vmatpush.msra.mxu0 0.0
    %206 = vmatpush.msra.mxu0 0.0
    %207 = vmatpush.msra.mxu0 0.0
    %208 = vmatpush.msra.mxu0 0.0
    %209 = vmatpush.msra.mxu0 0.0
    %210 = vmatpush.msra.mxu0 0.0
    %211 = vmatpush.msra.mxu0 0.0
    %212 = vmatpush.msra.mxu0 %v157
    %213 = vmatpush.msra.mxu0 %v155
    %214 = vmatpush.msra.mxu0 %v153
    %215 = vmatpush.msra.mxu0 %v151
    %216 = vmatmul.f32.gmra.mxu0 %v189
    %v217 = vpop.f32.mrf.mxu0
    %v218 = vadd.f32 %v170, %v217
    %219 = vmatmul.f32.gmra.mxu0 %v192
    %v220 = vpop.f32.mrf.mxu0
    %v221 = vadd.f32 %v175, %v220
    %222 = vmatmul.f32.gmra.mxu0 %v195
    %v223 = vpop.f32.mrf.mxu0
    %v224 = vadd.f32 %v180, %v223
    %225 = vmatmul.f32.gmra.mxu0 %v198
    %v226 = vpop.f32.mrf.mxu0
    %v227 = vadd.f32 %v185, %v226
    %228 = vdwg.mxu0
    %229 = vmatpush.msra.mxu0 0.0
    %230 = vmatpush.msra.mxu0 0.0
    %231 = vmatpush.msra.mxu0 0.0
    %232 = vmatpush.msra.mxu0 0.0
    %233 = vmatpush.msra.mxu0 0.0
    %234 = vmatpush.msra.mxu0 0.0
    %235 = vmatpush.msra.mxu0 0.0
    %236 = vmatpush.msra.mxu0 0.0
    %237 = vmatpush.msra.mxu0 0.0
    %238 = vmatpush.msra.mxu0 0.0
    %239 = vmatpush.msra.mxu0 0.0
    %240 = vmatpush.msra.mxu0 0.0
    %241 = vmatpush.msra.mxu0 %v158
    %242 = vmatpush.msra.mxu0 %v156
    %243 = vmatpush.msra.mxu0 %v154
    %244 = vmatpush.msra.mxu0 %v152
    %245 = vmatmul.f32.gmra.mxu0 %v189
    %v246 = vpop.f32.mrf.mxu0
    %v247 = vadd.f32 %v170, %v246
    %248 = vmatmul.f32.gmra.mxu0 %v192
    %v249 = vpop.f32.mrf.mxu0
    %v250 = vadd.f32 %v175, %v249
    %251 = vmatmul.f32.gmra.mxu0 %v195
    %v252 = vpop.f32.mrf.mxu0
    %v253 = vadd.f32 %v180, %v252
    %254 = vmatmul.f32.gmra.mxu0 %v198
    %v255 = vpop.f32.mrf.mxu0
    %v256 = vadd.f32 %v185, %v255
    %257 = vdwg.mxu0
    %v258 = vmax.f32 %v218, 0.0
    %v259 = vmax.f32 %v247, 0.0
    %v260 = vmax.f32 %v221, 0.0
    %v261 = vmax.f32 %v250, 0.0
    %v262 = vmax.f32 %v224, 0.0
    %v263 = vmax.f32 %v253, 0.0
    %v264 = vmax.f32 %v227, 0.0
    %v265 = vmax.f32 %v256, 0.0
    %v266 = vld [vmem:[%s6] sm:$0xff]
    %v267 = vld [vmem:[%s7] sm:$0xff]
    %269 = vset.pattern.permute.xlu0 0
    %270 = vperm.xlu0 %269, %v267
    %v271 = vpop.permute.xlu0 %270
    %v274 = vsel %vm187, %v266, 0
    %276 = vmatpush.msra.mxu0 0.0
    %277 = vmatpush.msra.mxu0 0.0
    %278 = vmatpush.msra.mxu0 0.0
    %279 = vmatpush.msra.mxu0 0.0
    %280 = vmatpush.msra.mxu0 0.0
    %281 = vmatpush.msra.mxu0 0.0
    %282 = vmatpush.msra.mxu0 0.0
    %283 = vmatpush.msra.mxu0 0.0
    %284 = vmatpush.msra.mxu0 0.0
    %285 = vmatpush.msra.mxu0 0.0
    %286 = vmatpush.msra.mxu0 0.0
    %287 = vmatpush.msra.mxu0 0.0
    %288 = vmatpush.msra.mxu0 %v264
    %289 = vmatpush.msra.mxu0 %v262
    %290 = vmatpush.msra.mxu0 %v260
    %291 = vmatpush.msra.mxu0 %v258
    %292 = vmatmul.f32.gmra.mxu0 %v274
    %v293 = vpop.f32.mrf.mxu0
    %v294 = vadd.f32 %v271, %v293
    %295 = vdwg.mxu0
    %296 = vmatpush.msra.mxu0 0.0
    %297 = vmatpush.msra.mxu0 0.0
    %298 = vmatpush.msra.mxu0 0.0
    %299 = vmatpush.msra.mxu0 0.0
    %300 = vmatpush.msra.mxu0 0.0
    %301 = vmatpush.msra.mxu0 0.0
    %302 = vmatpush.msra.mxu0 0.0
    %303 = vmatpush.msra.mxu0 0.0
    %304 = vmatpush.msra.mxu0 0.0
    %305 = vmatpush.msra.mxu0 0.0
    %306 = vmatpush.msra.mxu0 0.0
    %307 = vmatpush.msra.mxu0 0.0
    %308 = vmatpush.msra.mxu0 %v265
    %309 = vmatpush.msra.mxu0 %v263
    %310 = vmatpush.msra.mxu0 %v261
    %311 = vmatpush.msra.mxu0 %v259
    %312 = vmatmul.f32.gmra.mxu0 %v274
    %v313 = vpop.f32.mrf.mxu0
    %v314 = vadd.f32 %v271, %v313
    %315 = vdwg.mxu0
    %v316 = vld [vmem:[#allocation2] sm:$0xff]
    %v317 = vld [vmem:[#allocation2 + $0x8] sm:$0xff]
    %v318 = vunpack.c.l.bf16 %v316
    %v319 = vunpack.c.h.bf16 %v316
    %v320 = vunpack.c.l.bf16 %v317
    %v321 = vunpack.c.h.bf16 %v317
    %v322 = vperm.slane %v294, 0
    %v323 = vperm.slane %v314, 0
    %v324 = vmul.f32 %v322, %v318
    %v325 = vmul.f32 %v323, %v319
    %v326 = vmul.f32 %v322, %v320
    %v327 = vmul.f32 %v323, %v321
    %s328 = scalar_lea.vmem [#allocation2], 16
    %v329 = vld [vmem:[%s328] sm:$0xff]
    %v330 = vld [vmem:[%s328 + $0x8] sm:$0xff]
    %v331 = vunpack.c.l.bf16 %v329
    %v332 = vunpack.c.h.bf16 %v329
    %v333 = vunpack.c.l.bf16 %v330
    %v334 = vunpack.c.h.bf16 %v330
    %v335 = vperm.slane %v294, 1
    %v336 = vperm.slane %v314, 1
    %v337 = vmul.f32 %v335, %v331
    %v338 = vmul.f32 %v336, %v332
    %v339 = vmul.f32 %v335, %v333
    %v340 = vmul.f32 %v336, %v334
    %v341 = vadd.f32 %v324, %v337
    %v342 = vadd.f32 %v325, %v338
    %v343 = vadd.f32 %v326, %v339
    %v344 = vadd.f32 %v327, %v340
    %s345 = scalar_lea.vmem [#allocation2], 32
    %v346 = vld [vmem:[%s345] sm:$0xff]
    %v347 = vld [vmem:[%s345 + $0x8] sm:$0xff]
    %v348 = vunpack.c.l.bf16 %v346
    %v349 = vunpack.c.h.bf16 %v346
    %v350 = vunpack.c.l.bf16 %v347
    %v351 = vunpack.c.h.bf16 %v347
    %v352 = vperm.slane %v294, 2
    %v353 = vperm.slane %v314, 2
    %v354 = vmul.f32 %v352, %v348
    %v355 = vmul.f32 %v353, %v349
    %v356 = vmul.f32 %v352, %v350
    %v357 = vmul.f32 %v353, %v351
    %v358 = vadd.f32 %v341, %v354
    %v359 = vadd.f32 %v342, %v355
    %v360 = vadd.f32 %v343, %v356
    %v361 = vadd.f32 %v344, %v357
    %s362 = scalar_lea.vmem [#allocation2], 48
    %v363 = vld [vmem:[%s362] sm:$0xff]
    %v364 = vld [vmem:[%s362 + $0x8] sm:$0xff]
    %v365 = vunpack.c.l.bf16 %v363
    %v366 = vunpack.c.h.bf16 %v363
    %v367 = vunpack.c.l.bf16 %v364
    %v368 = vunpack.c.h.bf16 %v364
    %v369 = vperm.slane %v294, 3
    %v370 = vperm.slane %v314, 3
    %v371 = vmul.f32 %v369, %v365
    %v372 = vmul.f32 %v370, %v366
    %v373 = vmul.f32 %v369, %v367
    %v374 = vmul.f32 %v370, %v368
    %v375 = vadd.f32 %v358, %v371
    %v376 = vadd.f32 %v359, %v372
    %v377 = vadd.f32 %v360, %v373
    %v378 = vadd.f32 %v361, %v374
    %s379 = scalar_lea.vmem [#allocation2], 64
    %v380 = vld [vmem:[%s379] sm:$0xff]
    %v381 = vld [vmem:[%s379 + $0x8] sm:$0xff]
    %v382 = vunpack.c.l.bf16 %v380
    %v383 = vunpack.c.h.bf16 %v380
    %v384 = vunpack.c.l.bf16 %v381
    %v385 = vunpack.c.h.bf16 %v381
    %v386 = vperm.slane %v294, 4
    %v387 = vperm.slane %v314, 4
    %v388 = vmul.f32 %v386, %v382
    %v389 = vmul.f32 %v387, %v383
    %v390 = vmul.f32 %v386, %v384
    %v391 = vmul.f32 %v387, %v385
    %v392 = vadd.f32 %v375, %v388
    %v393 = vadd.f32 %v376, %v389
    %v394 = vadd.f32 %v377, %v390
    %v395 = vadd.f32 %v378, %v391
    %s396 = scalar_lea.vmem [#allocation2], 80
    %v397 = vld [vmem:[%s396] sm:$0xff]
    %v398 = vld [vmem:[%s396 + $0x8] sm:$0xff]
    %v399 = vunpack.c.l.bf16 %v397
    %v400 = vunpack.c.h.bf16 %v397
    %v401 = vunpack.c.l.bf16 %v398
    %v402 = vunpack.c.h.bf16 %v398
    %v403 = vperm.slane %v294, 5
    %v404 = vperm.slane %v314, 5
    %v405 = vmul.f32 %v403, %v399
    %v406 = vmul.f32 %v404, %v400
    %v407 = vmul.f32 %v403, %v401
    %v408 = vmul.f32 %v404, %v402
    %v409 = vadd.f32 %v392, %v405
    %v410 = vadd.f32 %v393, %v406
    %v411 = vadd.f32 %v394, %v407
    %v412 = vadd.f32 %v395, %v408
    %s413 = scalar_lea.vmem [#allocation2], 96
    %v414 = vld [vmem:[%s413] sm:$0xff]
    %v415 = vld [vmem:[%s413 + $0x8] sm:$0xff]
    %v416 = vunpack.c.l.bf16 %v414
    %v417 = vunpack.c.h.bf16 %v414
    %v418 = vunpack.c.l.bf16 %v415
    %v419 = vunpack.c.h.bf16 %v415
    %v420 = vperm.slane %v294, 6
    %v421 = vperm.slane %v314, 6
    %v422 = vmul.f32 %v420, %v416
    %v423 = vmul.f32 %v421, %v417
    %v424 = vmul.f32 %v420, %v418
    %v425 = vmul.f32 %v421, %v419
    %v426 = vadd.f32 %v409, %v422
    %v427 = vadd.f32 %v410, %v423
    %v428 = vadd.f32 %v411, %v424
    %v429 = vadd.f32 %v412, %v425
    %s430 = scalar_lea.vmem [#allocation2], 112
    %v431 = vld [vmem:[%s430] sm:$0xff]
    %v432 = vld [vmem:[%s430 + $0x8] sm:$0xff]
    %v433 = vunpack.c.l.bf16 %v431
    %v434 = vunpack.c.h.bf16 %v431
    %v435 = vunpack.c.l.bf16 %v432
    %v436 = vunpack.c.h.bf16 %v432
    %v437 = vperm.slane %v294, 7
    %v438 = vperm.slane %v314, 7
    %v439 = vmul.f32 %v437, %v433
    %v440 = vmul.f32 %v438, %v434
    %v441 = vmul.f32 %v437, %v435
    %v442 = vmul.f32 %v438, %v436
    %v443 = vadd.f32 %v426, %v439
    %v444 = vadd.f32 %v427, %v440
    %v445 = vadd.f32 %v428, %v441
    %v446 = vadd.f32 %v429, %v442
    %447 = vst [vmem:[#allocation5] sm:$0xff] %v443
    %448 = vst [vmem:[#allocation5 + $0x8] sm:$0xff] %v444
    %449 = vst [vmem:[#allocation5 + $0x10] sm:$0xff] %v445
    %450 = vst [vmem:[#allocation5 + $0x18] sm:$0xff] %v446
    // Predicated region
    $region38: #{filter_forward.1} parent=1 // pred_check
      _
    $region39: #{filter_forward.1} parent=1 // pred_check_branch
      %452 = sbr.rel (0) target = $region41
    $region40: #{filter_forward.1} parent=1 // pred_region
      %454 = vsyncadd [#allocation4], 0
      %s455 = sshll.u32 [#allocation5], 4
      %s456 = int_to_ptr.vmem [resolvable:$true] %s455
      %s457 = sshll.u32 %s8, 4
      %s458 = int_to_ptr.hbm [resolvable:$true] %s457
      %463 = dma.vmem_to_hbm [thread:$0]  %s456, 512, %s458, [#allocation4], 256, 256, 16
    $region41: #{filter_forward.1} parent=1 // pred_fallthru
      _
    // Predicated region
    $region42: #{filter_forward.1} parent=1 // pred_check
      _
    $region43: #{filter_forward.1} parent=1 // pred_check_branch
      %465 = sbr.rel (0) target = $region45
    $region44: #{filter_forward.1} parent=1 // pred_region
      %467 = dma.done [#allocation4], 512
    $region45: #{filter_forward.1} parent=1 // pred_fallthru
      _
    %468 = vsyncpa [#allocation3], 1
    %469 = vsyncpa [#allocation4], 1

</llo_original>
